<compile_context>
chip_gen: v7x
topology: tpu7x:2x2x1
jax: 0.10.0
libtpu: 0.0.40
codegen_flags: <defaults>
</compile_context>

<pallas_src>
import math

import jax
import jax.numpy as jnp
from jax.experimental import pallas as pl
from jax.experimental.pallas import tpu as pltpu


# ----------------------------------------------------------------------------
# helpers
# ----------------------------------------------------------------------------
def _round_up(x, m):
    return ((x + m - 1) // m) * m


def _default_bt(B, cap):
    # multiple of 8 (sublane); cap amortizes per-step overhead while keeping
    # per-relation padding waste bounded on the KG branch.
    return min(cap, _round_up(max(B, 8), 8))


def _vmem_limit_bytes(block_specs):
    """block_specs: iterable of (shape, dtype) for all per-step blocks."""
    total = 0
    for shape, dtype in block_specs:
        total += math.prod(shape) * jnp.dtype(dtype).itemsize
    # double/triple-buffered blocks + headroom; clamp to [32, 48] MiB
    # (48 MiB is still safe on v7x's 64 MiB physical VMEM).
    return int(min(max(3 * total + (2 << 20), 32 << 20), 48 << 20))


def _log_sigmoid(x):
    # Stable log(sigmoid(x)) = min(x, 0) - log1p(exp(-|x|)); VPU/EUP only.
    return jnp.minimum(x, 0.0) - jnp.log1p(jnp.exp(-jnp.abs(x)))


# ----------------------------------------------------------------------------
# KG branch kernel (relation-grouped tiles):
#   pos = || (h - pos_tail) @ Mr + r ||^2     (Mr shared per tile)
#   neg = || (h - neg_tail) @ Mr + r ||^2
#   per-row loss = log_sigmoid(pos - neg)     (summed in JAX outside)
# ----------------------------------------------------------------------------
def _kg_kernel(tile_rel_ref, tile_valid_ref, head_ref, rel_ref, pos_ref,
               neg_ref, mr_ref, out_ref):
    del tile_rel_ref  # consumed only by the Mr BlockSpec index_map
    valid = tile_valid_ref[pl.program_id(0)]

    @pl.when(valid > 0)
    def _():
        h = head_ref[...]                         # (bt, D)
        r = rel_ref[...].astype(jnp.float32)      # (bt, D)
        pt = pos_ref[...]                         # (bt, D)
        nt = neg_ref[...]                         # (bt, D)
        M = mr_ref[0]                             # (D, D) relation projection
        bt = h.shape[0]

        # One stacked matmul: Mr is pushed into the MXU once per tile.
        lhs = jnp.concatenate([h - pt, h - nt], axis=0)          # (2*bt, D)
        proj = jnp.dot(lhs, M, preferred_element_type=jnp.float32)
        pos_diff = proj[:bt] + r
        neg_diff = proj[bt:] + r
        pos_score = jnp.sum(pos_diff * pos_diff, axis=-1, keepdims=True)
        neg_score = jnp.sum(neg_diff * neg_diff, axis=-1, keepdims=True)
        out_ref[...] = _log_sigmoid(pos_score - neg_score)       # (bt, 1)

    @pl.when(valid == 0)
    def _():
        # Fully-padded tile: skip matmuls / transcendentals; rows never read.
        out_ref[...] = jnp.zeros_like(out_ref)


def kg_loss_pallas(ent_table, rel_table, mr_table, heads, rels, pos_t, neg_t,
                   *, bt=None, compute_dtype=None):
    """ent/rel tables: (n_ent, D)/(n_rels, D); mr_table: (n_rels, D, D);
    heads/rels/pos_t/neg_t: (B,) int ids."""
    B = heads.shape[0]
    D = ent_table.shape[1]
    n_rels = mr_table.shape[0]
    if bt is None:
        bt = _default_bt(B, 512)

    num_tiles = -(-B // bt) + n_rels        # static upper bound on #tiles
    P = num_tiles * bt                      # padded batch capacity

    rels = rels.astype(jnp.int32)

    # ---- group the batch by relation, entirely in *index* space -----------
    order = jnp.argsort(rels)
    rels_sorted = rels[order]
    counts = jnp.bincount(rels, length=n_rels)                # (n_rels,)
    tiles_per_rel = (counts + bt - 1) // bt
    padded_sizes = tiles_per_rel * bt
    group_start = jnp.cumsum(counts) - counts                 # excl. cumsum
    group_pad_start = jnp.cumsum(padded_sizes) - padded_sizes
    rank = jnp.arange(B) - group_start[rels_sorted]
    dest = group_pad_start[rels_sorted] + rank                # (B,) slot id

    pad_end = jnp.cumsum(padded_sizes)
    tile_starts = jnp.arange(num_tiles) * bt
    tile_rel = jnp.clip(
        jnp.searchsorted(pad_end, tile_starts, side="right"),
        0, n_rels - 1).astype(jnp.int32)                      # (num_tiles,)
    tile_valid = jnp.bincount(dest // bt, length=num_tiles).astype(jnp.int32)

    def place_ids(ids):
        # Scatter 4-byte ids (not D*4-byte rows) into their padded slots.
        return jnp.zeros((P,), jnp.int32).at[dest].set(ids[order].astype(jnp.int32))

    heads_p = place_ids(heads)
    rels_p = place_ids(rels)
    pos_p = place_ids(pos_t)
    neg_p = place_ids(neg_t)

    # Single gather per tensor, straight into the grouped/padded layout.
    head_e = ent_table[heads_p]               # (P, D)
    rel_e = rel_table[rels_p]
    pos_e = ent_table[pos_p]
    neg_e = ent_table[neg_p]
    if compute_dtype is not None:             # e.g. bf16 streaming on v6e/v7x
        head_e, rel_e, pos_e, neg_e = (
            x.astype(compute_dtype) for x in (head_e, rel_e, pos_e, neg_e))
        mr_table = mr_table.astype(compute_dtype)

    emb_spec = pl.BlockSpec((bt, D), lambda i, tr, tv: (i, 0))
    mr_spec = pl.BlockSpec((1, D, D), lambda i, tr, tv: (tr[i], 0, 0))
    out_spec = pl.BlockSpec((bt, 1), lambda i, tr, tv: (i, 0))

    vmem_limit = _vmem_limit_bytes(
        [((bt, D), head_e.dtype)] * 4
        + [((1, D, D), mr_table.dtype), ((bt, 1), jnp.float32)])

    out = pl.pallas_call(
        _kg_kernel,
        out_shape=jax.ShapeDtypeStruct((P, 1), jnp.float32),
        grid_spec=pltpu.PrefetchScalarGridSpec(
            num_scalar_prefetch=2,
            grid=(num_tiles,),
            in_specs=[emb_spec, emb_spec, emb_spec, emb_spec, mr_spec],
            out_specs=out_spec),
        compiler_params=pltpu.CompilerParams(
            dimension_semantics=("parallel",),   # shards tiles across TCs
            vmem_limit_bytes=vmem_limit),
    )(tile_rel, tile_valid, head_e, rel_e, pos_e, neg_e, mr_table)

    # Gather each real example's per-row loss from its padded slot; sum in JAX.
    return jnp.sum(out[:, 0][dest])


# ----------------------------------------------------------------------------
# Recommendation branch kernel:
#   per-row loss = log_sigmoid( <u, (pi+pe) - (ni+ne)> )     (summed in JAX)
# ----------------------------------------------------------------------------
def _rec_kernel(u_ref, pi_ref, pe_ref, ni_ref, ne_ref, out_ref):
    # Cast operands to f32 BEFORE the product so bf16 streaming doesn't round
    # the per-element products (accumulation stays f32).
    u = u_ref[...].astype(jnp.float32)                        # (bt, D)
    diff = ((pi_ref[...] + pe_ref[...])
            - (ni_ref[...] + ne_ref[...])).astype(jnp.float32)
    margin = jnp.sum(u * diff, axis=1, keepdims=True)         # (bt, 1)
    out_ref[...] = _log_sigmoid(margin)


def rec_loss_pallas(user_table, item_table, ent_table, users, poss, negs,
                    *, bt=None, compute_dtype=None):
    B = users.shape[0]
    D = user_table.shape[1]
    if bt is None:
        bt = _default_bt(B, 1024)

    num_tiles = -(-B // bt)
    P = num_tiles * bt

    def pad_ids(ids):
        # Pad 4-byte ids, not D*4-byte embedding rows.
        return jnp.zeros((P,), jnp.int32).at[:B].set(ids.astype(jnp.int32))

    users_p, poss_p, negs_p = map(pad_ids, (users, poss, negs))

    u = user_table[users_p]                   # (P, D) straight from the gather
    pi = item_table[poss_p]
    pe = ent_table[poss_p]
    ni = item_table[negs_p]
    ne = ent_table[negs_p]
    if compute_dtype is not None:
        u, pi, pe, ni, ne = (x.astype(compute_dtype) for x in (u, pi, pe, ni, ne))

    emb_spec = pl.BlockSpec((bt, D), lambda i: (i, 0))
    out_spec = pl.BlockSpec((bt, 1), lambda i: (i, 0))

    vmem_limit = _vmem_limit_bytes(
        [((bt, D), u.dtype)] * 5 + [((bt, 1), jnp.float32)])

    out = pl.pallas_call(
        _rec_kernel,
        out_shape=jax.ShapeDtypeStruct((P, 1), jnp.float32),
        grid=(num_tiles,),
        in_specs=[emb_spec] * 5,
        out_specs=out_spec,
        compiler_params=pltpu.CompilerParams(
            dimension_semantics=("parallel",),
            vmem_limit_bytes=vmem_limit),
    )(u, pi, pe, ni, ne)

    return jnp.sum(out[:B, 0])


# ----------------------------------------------------------------------------
# CKE module: parameters + forward dispatcher (gathers / grouping are JAX glue)
# ----------------------------------------------------------------------------
def xavier_uniform(key, shape):
    # Matches PyTorch nn.init.xavier_uniform_ fan computation.
    if len(shape) == 2:
        fan_out, fan_in = shape[0], shape[1]
    else:
        receptive = 1
        for s in shape[2:]:
            receptive *= s
        fan_in = shape[1] * receptive
        fan_out = shape[0] * receptive
    bound = (6.0 / (fan_in + fan_out)) ** 0.5
    return jax.random.uniform(key, shape, jnp.float32, -bound, bound)


class CKEPallas:
    def __init__(self, n_entities, n_rels, dim, key):
        self.dim = dim
        ks = jax.random.split(key, 5)
        self.user_emb_matrix = xavier_uniform(ks[0], (n_entities, dim))
        self.item_emb_matrix = xavier_uniform(ks[1], (n_entities, dim))
        self.ent_emb_matrix = xavier_uniform(ks[2], (n_entities, dim))
        self.Mr_matrix = xavier_uniform(ks[3], (n_rels, dim, dim))
        self.rel_emb_matrix = xavier_uniform(ks[4], (n_rels, dim))

    def forward(self, data, name, compute_dtype=None):
        # compute_dtype=jnp.bfloat16 is recommended on v6e/v7x (DMA-bound
        # kernels; f32 accumulation is kept in-kernel).  Default None (f32)
        # so results match the f32 reference bit-closely.
        if name == "kg":
            heads = data[:, 0]
            rels = data[:, 1]
            pos_t = data[:, 2]
            neg_t = data[:, 3]
            return kg_loss_pallas(self.ent_emb_matrix, self.rel_emb_matrix,
                                  self.Mr_matrix, heads, rels, pos_t, neg_t,
                                  compute_dtype=compute_dtype)
        else:
            users = data[:, 0]
            poss = data[:, 1]
            negs = data[:, 2]
            return rec_loss_pallas(self.user_emb_matrix, self.item_emb_matrix,
                                   self.ent_emb_matrix, users, poss, negs,
                                   compute_dtype=compute_dtype)

    # Pure-JAX references (faithful to the PyTorch module) for correctness.
    def forward_ref(self, data, name):
        if name == "kg":
            heads, rels, pos_t, neg_t = (data[:, i] for i in range(4))
            h = self.ent_emb_matrix[heads][:, None, :]     # (B,1,D)
            r = self.rel_emb_matrix[rels][:, None, :]
            pt = self.ent_emb_matrix[pos_t][:, None, :]
            nt = self.ent_emb_matrix[neg_t][:, None, :]
            Mr = self.Mr_matrix[rels]                      # (B,D,D)
            pos = jnp.matmul(h, Mr) + r - jnp.matmul(pt, Mr)
            neg = jnp.matmul(h, Mr) + r - jnp.matmul(nt, Mr)
            pos_s = jnp.sum(pos * pos, axis=(1, 2))
            neg_s = jnp.sum(neg * neg, axis=(1, 2))
            return jnp.sum(jnp.log(jax.nn.sigmoid(pos_s - neg_s)))
        else:
            users, poss, negs = (data[:, i] for i in range(3))
            u = self.user_emb_matrix[users]
            p = self.item_emb_matrix[poss] + self.ent_emb_matrix[poss]
            n = self.item_emb_matrix[negs] + self.ent_emb_matrix[negs]
            return jnp.sum(jnp.log(jax.nn.sigmoid(
                jnp.sum(u * p, axis=1) - jnp.sum(u * n, axis=1))))


# TODO(synk): get_scores / topk_eval / ctr_eval / get_predict are host-side
# Python ranking / sklearn-metric utilities, not TPU kernels; not ported.

if __name__ == "__main__":
    key = jax.random.PRNGKey(0)
    n_entities, n_rels, dim, B = 64, 8, 32, 16

    k_params, k_kg_e, k_kg_r, k_rec = jax.random.split(key, 4)
    model = CKEPallas(n_entities, n_rels, dim, k_params)

    # kg data: (B, 4) = [head_id, rel_id, pos_tail_id, neg_tail_id]
    ent_ids = jax.random.randint(k_kg_e, (B, 3), 0, n_entities)
    rel_ids = jax.random.randint(k_kg_r, (B, 1), 0, n_rels)
    kg_data = jnp.concatenate(
        [ent_ids[:, :1], rel_ids, ent_ids[:, 1:]], axis=1).astype(jnp.int32)

    # rec data: (B, 3) = [user_id, pos_item_id, neg_item_id]
    rec_data = jax.random.randint(k_rec, (B, 3), 0, n_entities).astype(jnp.int32)

    # f32 path (strict check against the pure-JAX reference).
    kg_loss = jax.block_until_ready(model.forward(kg_data, "kg"))
    rec_loss = jax.block_until_ready(model.forward(rec_data, "rec"))

    kg_ref = model.forward_ref(kg_data, "kg")
    rec_ref = model.forward_ref(rec_data, "rec")

    assert jnp.allclose(kg_loss, kg_ref, rtol=1e-4, atol=1e-4), (kg_loss, kg_ref)
    assert jnp.allclose(rec_loss, rec_ref, rtol=1e-4, atol=1e-4), (rec_loss, rec_ref)

    # bf16-streaming path (recommended on v6e/v7x): exercise compile & run.
    kg_bf16 = jax.block_until_ready(
        model.forward(kg_data, "kg", compute_dtype=jnp.bfloat16))
    rec_bf16 = jax.block_until_ready(
        model.forward(rec_data, "rec", compute_dtype=jnp.bfloat16))
    assert bool(jnp.isfinite(kg_bf16)) and bool(jnp.isfinite(rec_bf16))

    print("KERNEL_OK")
</pallas_src>

<mosaic_0001>
module attributes {stable_mosaic.version = 11 : i64} {
  func.func @_kg_kernel(%arg0: i32, %arg1: memref<9xi32, #tpu.memory_space<smem>>, %arg2: memref<9xi32, #tpu.memory_space<smem>>, %arg3: memref<16x32xf32, #tpu.memory_space<vmem>>, %arg4: memref<16x32xf32, #tpu.memory_space<vmem>>, %arg5: memref<16x32xf32, #tpu.memory_space<vmem>>, %arg6: memref<16x32xf32, #tpu.memory_space<vmem>>, %arg7: memref<1x32x32xf32, #tpu.memory_space<vmem>>, %arg8: memref<16x1xf32, #tpu.memory_space<vmem>>) attributes {dimension_semantics = [#tpu.dimension_semantics<parallel>], iteration_bounds = array<i64: 9>, scalar_prefetch = 2 : i64, scratch_operands = 0 : i64, tpu.core_type = #tpu.core_type<tc>, window_params = [{transform_indices = @transform_0, window_bounds = array<i64: 16, 32>}, {transform_indices = @transform_1, window_bounds = array<i64: 16, 32>}, {transform_indices = @transform_2, window_bounds = array<i64: 16, 32>}, {transform_indices = @transform_3, window_bounds = array<i64: 16, 32>}, {transform_indices = @transform_4, window_bounds = array<i64: 1, 32, 32>}, {transform_indices = @transform_5, window_bounds = array<i64: 16, 1>}]} {
    %0 = arith.index_cast %arg0 : i32 to index
    %1 = memref.load %arg2[%0] : memref<9xi32, #tpu.memory_space<smem>>
    %c0_i32 = arith.constant 0 : i32
    %2 = arith.cmpi sgt, %1, %c0_i32 : i32
    %3 = arith.extui %2 : i1 to i32
    %c0_i32_0 = arith.constant 0 : i32
    %4 = arith.cmpi ne, %3, %c0_i32_0 : i32
    scf.if %4 {
      %c0 = arith.constant 0 : index
      %c0_3 = arith.constant 0 : index
      %8 = vector.load %arg3[%c0, %c0_3] : memref<16x32xf32, #tpu.memory_space<vmem>>, vector<16x32xf32>
      %c0_4 = arith.constant 0 : index
      %c0_5 = arith.constant 0 : index
      %9 = vector.load %arg4[%c0_4, %c0_5] : memref<16x32xf32, #tpu.memory_space<vmem>>, vector<16x32xf32>
      %c0_6 = arith.constant 0 : index
      %c0_7 = arith.constant 0 : index
      %10 = vector.load %arg5[%c0_6, %c0_7] : memref<16x32xf32, #tpu.memory_space<vmem>>, vector<16x32xf32>
      %c0_8 = arith.constant 0 : index
      %c0_9 = arith.constant 0 : index
      %11 = vector.load %arg6[%c0_8, %c0_9] : memref<16x32xf32, #tpu.memory_space<vmem>>, vector<16x32xf32>
      %c0_10 = arith.constant 0 : index
      %c0_11 = arith.constant 0 : index
      %c0_12 = arith.constant 0 : index
      %12 = vector.load %arg7[%c0_10, %c0_11, %c0_12] : memref<1x32x32xf32, #tpu.memory_space<vmem>>, vector<1x32x32xf32>
      %13 = vector.shape_cast %12 : vector<1x32x32xf32> to vector<32x32xf32>
      %14 = arith.subf %8, %10 : vector<16x32xf32>
      %15 = arith.subf %8, %11 : vector<16x32xf32>
      %16 = tpu.concatenate %14, %15 in 0 : vector<16x32xf32>, vector<16x32xf32> -> vector<32x32xf32>
      %cst = arith.constant dense<0.000000e+00> : vector<32x32xf32>
      %17 = tpu.matmul %16, %13, %cst {dimension_numbers = #tpu.dot_dimension_numbers<[1], [0], [0], [1], [0, 0, 1, 1], [], []>} : vector<32x32xf32>, vector<32x32xf32>, vector<32x32xf32> -> vector<32x32xf32>
      %18 = vector.extract_strided_slice %17 {offsets = [0, 0], sizes = [16, 32], strides = [1, 1]} : vector<32x32xf32> to vector<16x32xf32>
      %19 = arith.addf %18, %9 : vector<16x32xf32>
      %20 = vector.extract_strided_slice %17 {offsets = [16, 0], sizes = [16, 32], strides = [1, 1]} : vector<32x32xf32> to vector<16x32xf32>
      %21 = arith.addf %20, %9 : vector<16x32xf32>
      %22 = arith.mulf %19, %19 : vector<16x32xf32>
      %cst_13 = arith.constant dense<0.000000e+00> : vector<16xf32>
      %23 = vector.multi_reduction <add>, %22, %cst_13 [1] : vector<16x32xf32> to vector<16xf32>
      %24 = vector.shape_cast %23 : vector<16xf32> to vector<16x1xf32>
      %25 = arith.mulf %21, %21 : vector<16x32xf32>
      %cst_14 = arith.constant dense<0.000000e+00> : vector<16xf32>
      %26 = vector.multi_reduction <add>, %25, %cst_14 [1] : vector<16x32xf32> to vector<16xf32>
      %27 = vector.shape_cast %26 : vector<16xf32> to vector<16x1xf32>
      %28 = arith.subf %24, %27 : vector<16x1xf32>
      %cst_15 = arith.constant 0.000000e+00 : f32
      %29 = vector.broadcast %cst_15 : f32 to vector<16x1xf32>
      %30 = arith.minimumf %28, %29 : vector<16x1xf32>
      %31 = math.absf %28 : vector<16x1xf32>
      %cst_16 = arith.constant 0.000000e+00 : f32
      %32 = vector.broadcast %cst_16 : f32 to vector<16x1xf32>
      %33 = arith.subf %32, %31 : vector<16x1xf32>
      %34 = math.exp %33 : vector<16x1xf32>
      %35 = math.log1p %34 : vector<16x1xf32>
      %36 = arith.subf %30, %35 : vector<16x1xf32>
      %c0_17 = arith.constant 0 : index
      %c0_18 = arith.constant 0 : index
      %37 = vector.load %arg8[%c0_17, %c0_18] : memref<16x1xf32, #tpu.memory_space<vmem>>, vector<16x1xf32>
      tpu.vector_store %arg8[%c0_17, %c0_18], %36 {strides = array<i32>} : memref<16x1xf32, #tpu.memory_space<vmem>>, vector<16x1xf32>,
    } else {
    }
    %c0_i32_1 = arith.constant 0 : i32
    %5 = arith.cmpi eq, %1, %c0_i32_1 : i32
    %6 = arith.extui %5 : i1 to i32
    %c0_i32_2 = arith.constant 0 : i32
    %7 = arith.cmpi ne, %6, %c0_i32_2 : i32
    scf.if %7 {
      %cst = arith.constant 0.000000e+00 : f32
      %8 = vector.broadcast %cst : f32 to vector<16x1xf32>
      %c0 = arith.constant 0 : index
      %c0_3 = arith.constant 0 : index
      %9 = vector.load %arg8[%c0, %c0_3] : memref<16x1xf32, #tpu.memory_space<vmem>>, vector<16x1xf32>
      tpu.vector_store %arg8[%c0, %c0_3], %8 {strides = array<i32>} : memref<16x1xf32, #tpu.memory_space<vmem>>, vector<16x1xf32>,
    } else {
    }
    return
  }
  func.func @transform_0(%arg0: i32, %arg1: memref<9xi32, #tpu.memory_space<smem>>, %arg2: memref<9xi32, #tpu.memory_space<smem>>) -> (i32, i32) {
    %c0_i32 = arith.constant 0 : i32
    %c0_i32_0 = arith.constant 0 : i32
    return %arg0, %c0_i32 : i32, i32
  }
  func.func @transform_1(%arg0: i32, %arg1: memref<9xi32, #tpu.memory_space<smem>>, %arg2: memref<9xi32, #tpu.memory_space<smem>>) -> (i32, i32) {
    %c0_i32 = arith.constant 0 : i32
    %c0_i32_0 = arith.constant 0 : i32
    return %arg0, %c0_i32 : i32, i32
  }
  func.func @transform_2(%arg0: i32, %arg1: memref<9xi32, #tpu.memory_space<smem>>, %arg2: memref<9xi32, #tpu.memory_space<smem>>) -> (i32, i32) {
    %c0_i32 = arith.constant 0 : i32
    %c0_i32_0 = arith.constant 0 : i32
    return %arg0, %c0_i32 : i32, i32
  }
  func.func @transform_3(%arg0: i32, %arg1: memref<9xi32, #tpu.memory_space<smem>>, %arg2: memref<9xi32, #tpu.memory_space<smem>>) -> (i32, i32) {
    %c0_i32 = arith.constant 0 : i32
    %c0_i32_0 = arith.constant 0 : i32
    return %arg0, %c0_i32 : i32, i32
  }
  func.func @transform_4(%arg0: i32, %arg1: memref<9xi32, #tpu.memory_space<smem>>, %arg2: memref<9xi32, #tpu.memory_space<smem>>) -> (i32, i32, i32) {
    %0 = arith.index_cast %arg0 : i32 to index
    %1 = memref.load %arg1[%0] : memref<9xi32, #tpu.memory_space<smem>>
    %c0_i32 = arith.constant 0 : i32
    %c0_i32_0 = arith.constant 0 : i32
    %c0_i32_1 = arith.constant 0 : i32
    return %1, %c0_i32, %c0_i32_0 : i32, i32, i32
  }
  func.func @transform_5(%arg0: i32, %arg1: memref<9xi32, #tpu.memory_space<smem>>, %arg2: memref<9xi32, #tpu.memory_space<smem>>) -> (i32, i32) {
    %c0_i32 = arith.constant 0 : i32
    %c0_i32_0 = arith.constant 0 : i32
    return %arg0, %c0_i32 : i32, i32
  }
}

</mosaic_0001>

<llo_original>
// kernel: tpu_custom_call.1
$region0: #{tpu_custom_call.1}
  #allocation0 [shape = 'u32[]', space=smem, size = 0x4, offset = 0x4, fixed_abs, tag = 'smem constant byte address 0x4 - core index']
  #allocation1 [shape = 'u32[144,128]{1,0:T(1,128)}', space=vmem, size = 0x12000, scoped, tag = 'internal scratch']
  #allocation2 [shape = 's32[1]{0}', space=sflag, size = 0x4, scoped, tag = 'scoped memory for tpu_custom_call.1']
  #allocation3 [shape = 'u8[512]{0}', space=smem, size = 0x200, scoped, tag = 'prefetched SMEM operand 0']
  #allocation4 [shape = 'u8[512]{0}', space=smem, size = 0x200, scoped, tag = 'prefetched SMEM operand 1']
  %s0 = inlined_call_operand.vmem [shape: s32[9], index: 0, kind: input, shape index: {}]
  %s1 = inlined_call_operand.vmem [shape: s32[9], index: 1, kind: input, shape index: {}]
  %s2 = inlined_call_operand.vmem [shape: f32[144,32], index: 2, kind: input, shape index: {}]
  %s3 = inlined_call_operand.vmem [shape: f32[144,32], index: 3, kind: input, shape index: {}]
  %s4 = inlined_call_operand.vmem [shape: f32[144,32], index: 4, kind: input, shape index: {}]
  %s5 = inlined_call_operand.vmem [shape: f32[144,32], index: 5, kind: input, shape index: {}]
  %s6 = inlined_call_operand.vmem [shape: f32[8,32,32], index: 6, kind: input, shape index: {}]
  %s7 = inlined_call_operand.vmem [shape: f32[144,1], index: 7, kind: output, shape index: {}]
  %s8 = sld [smem:[#allocation0]]
  $region61: #{tpu_custom_call.1} parent=0
    _
  %s10 = ssub.s32 1, %s8
  %s11 = scalar_select 0, %s10, %s8
  %s12 = sshll.u32 %s0, 4
  %s13 = int_to_ptr.vmem [resolvable:$true] %s12
  %15 = dma.vmem_to_smem %s13, 16, [#allocation3], [#allocation2]
  %s16 = sshll.u32 %s1, 4
  %s17 = int_to_ptr.vmem [resolvable:$true] %s16
  %19 = dma.vmem_to_smem %s17, 16, [#allocation4], [#allocation2]
  %20 = dma.done [#allocation2], 32
  %21 = sfence
  loop: start=0, step=1, limit=11
  $region2: #{tpu_custom_call.1} parent=0 // loop_pre_header
    _
  $region3: #{tpu_custom_call.1} parent=0 // loop_header
    %s23 = sphi 0, %s27
    %p24 = scmp.ge.s32.totalorder %s23, 11
    %s33 = sphi 0, %s35
    %s36 = sphi 0, %s33
    %s37 = sphi 0, %s36
    %s53 = sphi 0, %s37
    %s59 = sphi 0, %s61
    %s62 = sphi 0, %s59
    %s63 = sphi 0, %s62
    %s79 = sphi 0, %s63
    %s85 = sphi 0, %s87
    %s88 = sphi 0, %s85
    %s89 = sphi 0, %s88
    %s105 = sphi 0, %s89
    %s111 = sphi 0, %s113
    %s114 = sphi 0, %s111
    %s115 = sphi 0, %s114
    %s131 = sphi 0, %s115
    %s139 = sphi 0, %s141
    %s142 = sphi 0, %s139
    %s143 = sphi 0, %s142
    %s159 = sphi 0, %s143
    %s165 = sphi 0, %s167
    %s168 = sphi 0, %s165
    %s169 = sphi 0, %s168
    %s185 = sphi 0, %s169
  $region4: #{tpu_custom_call.1} parent=0 // loop_header_branch
    %26 = sbr.rel (%p24) target = $region8
  $region5: #{tpu_custom_call.1} parent=0 // loop_body
    %s28 = ssub.s32 %s23, 1
    %s29 = ssub.s32 %s23, 2
    %s30 = sadd.s32 %s23, 1
    %s31 = ssub.s32 %s23, %s30
    %p32 = scmp.eq.s32.totalorder %s31, 0
    %s34 = sadd.s32 %s33, 1
    %s35 = scalar_select %p32, %s33, %s34
    %p38 = pneg %p32
    %p39 = scmp.eq.s32.totalorder %s23, 8
    %p40 = por %p38, %p39
    %p41 = scmp.ne.s32.totalorder %s33, %s36
    %p42 = scmp.eq.s32.totalorder %s23, 0
    %p43 = por %p41, %p42
    %p44 = scmp.ne.s32.totalorder %s33, %s36
    %p45 = scmp.eq.s32.totalorder %s28, 8
    %p46 = por %p44, %p45
    %p47 = scmp.ne.s32.totalorder %s36, %s37
    %p48 = scmp.eq.s32.totalorder %s28, 0
    %p49 = por %p47, %p48
    %p50 = scmp.ne.s32.totalorder %s36, %s37
    %p51 = scmp.eq.s32.totalorder %s29, 8
    %p52 = por %p50, %p51
    %p54 = scmp.ne.s32.totalorder %s37, %s53
    %p55 = scmp.eq.s32.totalorder %s29, 0
    %p56 = por %p54, %p55
    %s57 = ssub.s32 %s23, %s30
    %p58 = scmp.eq.s32.totalorder %s57, 0
    %s60 = sadd.s32 %s59, 1
    %s61 = scalar_select %p58, %s59, %s60
    %p64 = pneg %p58
    %p65 = scmp.eq.s32.totalorder %s23, 8
    %p66 = por %p64, %p65
    %p67 = scmp.ne.s32.totalorder %s59, %s62
    %p68 = scmp.eq.s32.totalorder %s23, 0
    %p69 = por %p67, %p68
    %p70 = scmp.ne.s32.totalorder %s59, %s62
    %p71 = scmp.eq.s32.totalorder %s28, 8
    %p72 = por %p70, %p71
    %p73 = scmp.ne.s32.totalorder %s62, %s63
    %p74 = scmp.eq.s32.totalorder %s28, 0
    %p75 = por %p73, %p74
    %p76 = scmp.ne.s32.totalorder %s62, %s63
    %p77 = scmp.eq.s32.totalorder %s29, 8
    %p78 = por %p76, %p77
    %p80 = scmp.ne.s32.totalorder %s63, %s79
    %p81 = scmp.eq.s32.totalorder %s29, 0
    %p82 = por %p80, %p81
    %s83 = ssub.s32 %s23, %s30
    %p84 = scmp.eq.s32.totalorder %s83, 0
    %s86 = sadd.s32 %s85, 1
    %s87 = scalar_select %p84, %s85, %s86
    %p90 = pneg %p84
    %p91 = scmp.eq.s32.totalorder %s23, 8
    %p92 = por %p90, %p91
    %p93 = scmp.ne.s32.totalorder %s85, %s88
    %p94 = scmp.eq.s32.totalorder %s23, 0
    %p95 = por %p93, %p94
    %p96 = scmp.ne.s32.totalorder %s85, %s88
    %p97 = scmp.eq.s32.totalorder %s28, 8
    %p98 = por %p96, %p97
    %p99 = scmp.ne.s32.totalorder %s88, %s89
    %p100 = scmp.eq.s32.totalorder %s28, 0
    %p101 = por %p99, %p100
    %p102 = scmp.ne.s32.totalorder %s88, %s89
    %p103 = scmp.eq.s32.totalorder %s29, 8
    %p104 = por %p102, %p103
    %p106 = scmp.ne.s32.totalorder %s89, %s105
    %p107 = scmp.eq.s32.totalorder %s29, 0
    %p108 = por %p106, %p107
    %s109 = ssub.s32 %s23, %s30
    %p110 = scmp.eq.s32.totalorder %s109, 0
    %s112 = sadd.s32 %s111, 1
    %s113 = scalar_select %p110, %s111, %s112
    %p116 = pneg %p110
    %p117 = scmp.eq.s32.totalorder %s23, 8
    %p118 = por %p116, %p117
    %p119 = scmp.ne.s32.totalorder %s111, %s114
    %p120 = scmp.eq.s32.totalorder %s23, 0
    %p121 = por %p119, %p120
    %p122 = scmp.ne.s32.totalorder %s111, %s114
    %p123 = scmp.eq.s32.totalorder %s28, 8
    %p124 = por %p122, %p123
    %p125 = scmp.ne.s32.totalorder %s114, %s115
    %p126 = scmp.eq.s32.totalorder %s28, 0
    %p127 = por %p125, %p126
    %p128 = scmp.ne.s32.totalorder %s114, %s115
    %p129 = scmp.eq.s32.totalorder %s29, 8
    %p130 = por %p128, %p129
    %p132 = scmp.ne.s32.totalorder %s115, %s131
    %p133 = scmp.eq.s32.totalorder %s29, 0
    %p134 = por %p132, %p133
    %s135 = sld [smem:[#allocation3 + %s23]]
    %s136 = sld [smem:[#allocation3 + %s30]]
    %s137 = ssub.s32 %s135, %s136
    %p138 = scmp.eq.s32.totalorder %s137, 0
    %s140 = sadd.s32 %s139, 1
    %s141 = scalar_select %p138, %s139, %s140
    %p144 = pneg %p138
    %p145 = scmp.eq.s32.totalorder %s23, 8
    %p146 = por %p144, %p145
    %p147 = scmp.ne.s32.totalorder %s139, %s142
    %p148 = scmp.eq.s32.totalorder %s23, 0
    %p149 = por %p147, %p148
    %p150 = scmp.ne.s32.totalorder %s139, %s142
    %p151 = scmp.eq.s32.totalorder %s28, 8
    %p152 = por %p150, %p151
    %p153 = scmp.ne.s32.totalorder %s142, %s143
    %p154 = scmp.eq.s32.totalorder %s28, 0
    %p155 = por %p153, %p154
    %p156 = scmp.ne.s32.totalorder %s142, %s143
    %p157 = scmp.eq.s32.totalorder %s29, 8
    %p158 = por %p156, %p157
    %p160 = scmp.ne.s32.totalorder %s143, %s159
    %p161 = scmp.eq.s32.totalorder %s29, 0
    %p162 = por %p160, %p161
    %s163 = ssub.s32 %s23, %s30
    %p164 = scmp.eq.s32.totalorder %s163, 0
    %s166 = sadd.s32 %s165, 1
    %s167 = scalar_select %p164, %s165, %s166
    %p170 = pneg %p164
    %p171 = scmp.eq.s32.totalorder %s23, 8
    %p172 = por %p170, %p171
    %p173 = scmp.ne.s32.totalorder %s165, %s168
    %p174 = scmp.eq.s32.totalorder %s23, 0
    %p175 = por %p173, %p174
    %p176 = scmp.ne.s32.totalorder %s165, %s168
    %p177 = scmp.eq.s32.totalorder %s28, 8
    %p178 = por %p176, %p177
    %p179 = scmp.ne.s32.totalorder %s168, %s169
    %p180 = scmp.eq.s32.totalorder %s28, 0
    %p181 = por %p179, %p180
    %p182 = scmp.ne.s32.totalorder %s168, %s169
    %p183 = scmp.eq.s32.totalorder %s29, 8
    %p184 = por %p182, %p183
    %p186 = scmp.ne.s32.totalorder %s169, %s185
    %p187 = scmp.eq.s32.totalorder %s29, 0
    %p188 = por %p186, %p187
    %p189 = scmp.le.s32.totalorder 1, %s23
    %p190 = scmp.lt.s32.totalorder %s23, 10
    %p191 = pnand %p189, %p190
    %p192 = pneg %p191
    // Predicated region
    $region9: #{tpu_custom_call.1} parent=5 // pred_check
      _
    $region10: #{tpu_custom_call.1} parent=5 // pred_check_branch
      %194 = sbr.rel (%p191) target = $region12
    $region11: #{tpu_custom_call.1} parent=5 // pred_region
      %s195 = ssub.s32 %s23, 1
    $region12: #{tpu_custom_call.1} parent=5 // pred_fallthru
      _
    %p196 = scmp.lt.s32.totalorder %s23, 9
    // Predicated region
    $region13: #{tpu_custom_call.1} parent=5 // pred_check
      %p197 = pneg %p196
    $region14: #{tpu_custom_call.1} parent=5 // pred_check_branch
      %199 = sbr.rel (%p197) target = $region16
    $region15: #{tpu_custom_call.1} parent=5 // pred_region
      // Predicated region
      $region17: #{tpu_custom_call.1} parent=15 // pred_check
        %p200 = pneg %p43
      $region18: #{tpu_custom_call.1} parent=15 // pred_check_branch
        %202 = sbr.rel (%p200) target = $region20
      $region19: #{tpu_custom_call.1} parent=15 // pred_region
        %s203 = smul.u32 2, %s23
        %p204 = scmp.lt.s32.totalorder %s203, 17
        %s205 = scalar_select %p204, %s203, 17
        %s206 = smul.addr %s205, 8
        %s207 = scalar_lea.vmem %s2, %s206
        %s208 = smul.u32 2, %s23
      $region20: #{tpu_custom_call.1} parent=15 // pred_fallthru
        _
      // Predicated region
      $region21: #{tpu_custom_call.1} parent=15 // pred_check
        %p209 = pneg %p69
      $region22: #{tpu_custom_call.1} parent=15 // pred_check_branch
        %211 = sbr.rel (%p209) target = $region24
      $region23: #{tpu_custom_call.1} parent=15 // pred_region
        %s212 = smul.u32 2, %s23
        %p213 = scmp.lt.s32.totalorder %s212, 17
        %s214 = scalar_select %p213, %s212, 17
        %s215 = smul.addr %s214, 8
        %s216 = scalar_lea.vmem %s3, %s215
        %s217 = smul.u32 2, %s23
      $region24: #{tpu_custom_call.1} parent=15 // pred_fallthru
        _
      // Predicated region
      $region25: #{tpu_custom_call.1} parent=15 // pred_check
        %p218 = pneg %p95
      $region26: #{tpu_custom_call.1} parent=15 // pred_check_branch
        %220 = sbr.rel (%p218) target = $region28
      $region27: #{tpu_custom_call.1} parent=15 // pred_region
        %s221 = smul.u32 2, %s23
        %p222 = scmp.lt.s32.totalorder %s221, 17
        %s223 = scalar_select %p222, %s221, 17
        %s224 = smul.addr %s223, 8
        %s225 = scalar_lea.vmem %s4, %s224
        %s226 = smul.u32 2, %s23
      $region28: #{tpu_custom_call.1} parent=15 // pred_fallthru
        _
      // Predicated region
      $region29: #{tpu_custom_call.1} parent=15 // pred_check
        %p227 = pneg %p121
      $region30: #{tpu_custom_call.1} parent=15 // pred_check_branch
        %229 = sbr.rel (%p227) target = $region32
      $region31: #{tpu_custom_call.1} parent=15 // pred_region
        %s230 = smul.u32 2, %s23
        %p231 = scmp.lt.s32.totalorder %s230, 17
        %s232 = scalar_select %p231, %s230, 17
        %s233 = smul.addr %s232, 8
        %s234 = scalar_lea.vmem %s5, %s233
        %s235 = smul.u32 2, %s23
      $region32: #{tpu_custom_call.1} parent=15 // pred_fallthru
        _
      // Predicated region
      $region33: #{tpu_custom_call.1} parent=15 // pred_check
        %p236 = pneg %p149
      $region34: #{tpu_custom_call.1} parent=15 // pred_check_branch
        %238 = sbr.rel (%p236) target = $region36
      $region35: #{tpu_custom_call.1} parent=15 // pred_region
        %s239 = sld [smem:[#allocation3 + %s23]]
        %p240 = scmp.lt.s32.totalorder %s239, 7
        %s241 = scalar_select %p240, %s239, 7
        %s242 = smul.addr %s241, 4
        %s243 = smul.addr %s242, 8
        %s244 = scalar_lea.vmem %s6, %s243
        %s245 = sld [smem:[#allocation3 + %s23]]
      $region36: #{tpu_custom_call.1} parent=15 // pred_fallthru
        _
    $region16: #{tpu_custom_call.1} parent=5 // pred_fallthru
      _
    %p246 = scmp.le.s32.totalorder 1, %s23
    %p247 = scmp.lt.s32.totalorder %s23, 10
    %p248 = pnand %p246, %p247
    %p249 = pneg %p248
    // Predicated region
    $region37: #{tpu_custom_call.1} parent=5 // pred_check
      _
    $region38: #{tpu_custom_call.1} parent=5 // pred_check_branch
      %251 = sbr.rel (%p248) target = $region40
    $region39: #{tpu_custom_call.1} parent=5 // pred_region
      %s252 = ssub.s32 %s23, 1
      %s253 = smul.u32 2, %s28
      %p254 = scmp.lt.s32.totalorder %s253, 17
      %s255 = scalar_select %p254, %s253, 17
      %s256 = smul.addr %s255, 8
      %s257 = scalar_lea.vmem %s2, %s256
      %p258 = pneg %p49
      %p259 = pneg %p46
      %s260 = smul.u32 2, %s28
      %p261 = scmp.lt.s32.totalorder %s260, 17
      %s262 = scalar_select %p261, %s260, 17
      %s263 = smul.addr %s262, 8
      %s264 = scalar_lea.vmem %s3, %s263
      %p265 = pneg %p75
      %p266 = pneg %p72
      %s267 = smul.u32 2, %s28
      %p268 = scmp.lt.s32.totalorder %s267, 17
      %s269 = scalar_select %p268, %s267, 17
      %s270 = smul.addr %s269, 8
      %s271 = scalar_lea.vmem %s4, %s270
      %p272 = pneg %p101
      %p273 = pneg %p98
      %s274 = smul.u32 2, %s28
      %p275 = scmp.lt.s32.totalorder %s274, 17
      %s276 = scalar_select %p275, %s274, 17
      %s277 = smul.addr %s276, 8
      %s278 = scalar_lea.vmem %s5, %s277
      %p279 = pneg %p127
      %p280 = pneg %p124
      %s281 = sld [smem:[#allocation3 + %s28]]
      %p282 = scmp.lt.s32.totalorder %s281, 7
      %s283 = scalar_select %p282, %s281, 7
      %s284 = smul.addr %s283, 4
      %s285 = smul.addr %s284, 8
      %s286 = scalar_lea.vmem %s6, %s285
      %p287 = pneg %p155
      %p288 = pneg %p152
      %p289 = pneg %p181
      %p290 = pneg %p178
      %s291 = smul.u32 2, %s28
      %p292 = scmp.lt.s32.totalorder %s291, 17
      %s293 = scalar_select %p292, %s291, 17
      %s294 = smul.addr %s293, 8
      %s295 = scalar_lea.vmem %s7, %s294
      %s296 = smul.u32 2, %s28
      %p297 = scmp.lt.s32.totalorder %s296, 17
      %s298 = scalar_select %p297, %s296, 17
      %s299 = smul.addr %s298, 8
      %s300 = scalar_lea.vmem %s2, %s299
      %s301 = smul.u32 2, %s28
      %s302 = smul.u32 2, %s28
      %p303 = scmp.lt.s32.totalorder %s302, 17
      %s304 = scalar_select %p303, %s302, 17
      %s305 = smul.addr %s304, 8
      %s306 = scalar_lea.vmem %s3, %s305
      %s307 = smul.u32 2, %s28
      %s308 = smul.u32 2, %s28
      %p309 = scmp.lt.s32.totalorder %s308, 17
      %s310 = scalar_select %p309, %s308, 17
      %s311 = smul.addr %s310, 8
      %s312 = scalar_lea.vmem %s4, %s311
      %s313 = smul.u32 2, %s28
      %s314 = smul.u32 2, %s28
      %p315 = scmp.lt.s32.totalorder %s314, 17
      %s316 = scalar_select %p315, %s314, 17
      %s317 = smul.addr %s316, 8
      %s318 = scalar_lea.vmem %s5, %s317
      %s319 = smul.u32 2, %s28
      %s320 = sld [smem:[#allocation3 + %s28]]
      %p321 = scmp.lt.s32.totalorder %s320, 7
      %s322 = scalar_select %p321, %s320, 7
      %s323 = smul.addr %s322, 4
      %s324 = smul.addr %s323, 8
      %s325 = scalar_lea.vmem %s6, %s324
      %s326 = sld [smem:[#allocation3 + %s28]]
      %s327 = smul.u32 2, %s28
      %p328 = scmp.lt.s32.totalorder %s327, 17
      %s329 = scalar_select %p328, %s327, 17
      %s330 = smul.addr %s329, 8
      %s331 = scalar_lea.vmem %s7, %s330
      %s332 = smul.u32 2, %s28
      %s333 = sld [smem:[#allocation4 + %s28]]
      %p334 = scmp.gt.s32.totalorder %s333, 0
      // Predicated region
      $region41: #{tpu_custom_call.1} parent=39 // pred_check
        %p335 = pneg %p334
      $region42: #{tpu_custom_call.1} parent=39 // pred_check_branch
        %337 = sbr.rel (%p335) target = $region44
      $region43: #{tpu_custom_call.1} parent=39 // pred_region
        %v338 = vld [vmem:[%s300] sm:$0xff]
        %v339 = vld [vmem:[%s300 + $0x8] sm:$0xff]
        %v340 = vld [vmem:[%s306] sm:$0xff]
        %v341 = vld [vmem:[%s306 + $0x8] sm:$0xff]
        %v342 = vld [vmem:[%s312] sm:$0xff]
        %v343 = vld [vmem:[%s312 + $0x8] sm:$0xff]
        %v344 = vld [vmem:[%s318] sm:$0xff]
        %v345 = vld [vmem:[%s318 + $0x8] sm:$0xff]
        %v346 = vld [vmem:[%s325] sm:$0xff]
        %v347 = vld [vmem:[%s325 + $0x8] sm:$0xff]
        %v348 = vld [vmem:[%s325 + $0x10] sm:$0xff]
        %v349 = vld [vmem:[%s325 + $0x18] sm:$0xff]
        %v350 = vsub.f32 %v338, %v342
        %v351 = vsub.f32 %v339, %v343
        %v352 = vsub.f32 %v338, %v344
        %v353 = vsub.f32 %v339, %v345
        %vm354 = vcmask 261120
        %v356 = vsel %vm354, %v350, 0
        %v359 = vsel %vm354, %v351, 0
        %v362 = vsel %vm354, %v352, 0
        %v365 = vsel %vm354, %v353, 0
        %367 = vmatprep.subr.mxu0 0.0
        %368 = vmatpush1.msra.mxu0 %v346
        %369 = vmatprep.subr.mxu0 0.0
        %370 = vmatpush1.msra.mxu0 %v347
        %371 = vmatprep.subr.mxu0 0.0
        %372 = vmatpush1.msra.mxu0 %v348
        %373 = vmatprep.subr.mxu0 0.0
        %374 = vmatpush1.msra.mxu0 %v349
        %375 = vmatprep.subr.mxu0 0.0
        %376 = vmatpush1.msra.mxu0 0.0
        %377 = vmatprep.subr.mxu0 0.0
        %378 = vmatpush1.msra.mxu0 0.0
        %379 = vmatprep.subr.mxu0 0.0
        %380 = vmatpush1.msra.mxu0 0.0
        %381 = vmatprep.subr.mxu0 0.0
        %382 = vmatpush1.msra.mxu0 0.0
        %383 = vmatprep.subr.mxu0 0.0
        %384 = vmatpush1.msra.mxu0 0.0
        %385 = vmatprep.subr.mxu0 0.0
        %386 = vmatpush1.msra.mxu0 0.0
        %387 = vmatprep.subr.mxu0 0.0
        %388 = vmatpush1.msra.mxu0 0.0
        %389 = vmatprep.subr.mxu0 0.0
        %390 = vmatpush1.msra.mxu0 0.0
        %391 = vmatprep.subr.mxu0 0.0
        %392 = vmatpush1.msra.mxu0 0.0
        %393 = vmatprep.subr.mxu0 0.0
        %394 = vmatpush1.msra.mxu0 0.0
        %395 = vmatprep.subr.mxu0 0.0
        %396 = vmatpush1.msra.mxu0 0.0
        %397 = vmatprep.subr.mxu0 0.0
        %398 = vmatpush1.msra.mxu0 0.0
        %399 = vmatprep.subr.mxu0 0.0
        %400 = vmatpush1.msra.mxu0 0.0
        %401 = vmatprep.subr.mxu0 0.0
        %402 = vmatpush1.msra.mxu0 0.0
        %403 = vmatprep.subr.mxu0 0.0
        %404 = vmatpush1.msra.mxu0 0.0
        %405 = vmatprep.subr.mxu0 0.0
        %406 = vmatpush1.msra.mxu0 0.0
        %407 = vmatprep.subr.mxu0 0.0
        %408 = vmatpush1.msra.mxu0 0.0
        %409 = vmatprep.subr.mxu0 0.0
        %410 = vmatpush1.msra.mxu0 0.0
        %411 = vmatprep.subr.mxu0 0.0
        %412 = vmatpush1.msra.mxu0 0.0
        %413 = vmatprep.subr.mxu0 0.0
        %414 = vmatpush1.msra.mxu0 0.0
        %415 = vmatprep.subr.mxu0 0.0
        %416 = vmatpush1.msra.mxu0 0.0
        %417 = vmatprep.subr.mxu0 0.0
        %418 = vmatpush1.msra.mxu0 0.0
        %419 = vmatprep.subr.mxu0 0.0
        %420 = vmatpush1.msra.mxu0 0.0
        %421 = vmatprep.subr.mxu0 0.0
        %422 = vmatpush1.msra.mxu0 0.0
        %423 = vmatprep.subr.mxu0 0.0
        %424 = vmatpush1.msra.mxu0 0.0
        %425 = vmatprep.subr.mxu0 0.0
        %426 = vmatpush1.msra.mxu0 0.0
        %427 = vmatprep.subr.mxu0 0.0
        %428 = vmatpush1.msra.mxu0 0.0
        %429 = vmatprep.subr.mxu0 0.0
        %430 = vmatpush1.msra.mxu0 0.0
        %431 = vmatprep.mubr.f32.mxu0 0.0
        %432 = vmatmul.mubr.f32.gmra.mrb[0].mxu0 %v356
        %v433 = vpop.f32.mrb[0].mxu0
        %v434 = vadd.f32 0.0, %v433
        %v435 = vpop.f32.mrb[0].mxu0
        %436 = vmatprep.mubr.f32.mxu0 0.0
        %437 = vmatmul.mubr.f32.gmra.mrb[0].mxu0 %v359
        %v438 = vpop.f32.mrb[0].mxu0
        %v439 = vadd.f32 0.0, %v438
        %v440 = vpop.f32.mrb[0].mxu0
        %441 = vmatprep.mubr.f32.mxu0 0.0
        %442 = vmatmul.mubr.f32.gmra.mrb[0].mxu0 %v362
        %v443 = vpop.f32.mrb[0].mxu0
        %v444 = vadd.f32 0.0, %v443
        %v445 = vpop.f32.mrb[0].mxu0
        %446 = vmatprep.mubr.f32.mxu0 0.0
        %447 = vmatmul.mubr.f32.gmra.mrb[0].mxu0 %v365
        %v448 = vpop.f32.mrb[0].mxu0
        %v449 = vadd.f32 0.0, %v448
        %v450 = vpop.f32.mrb[0].mxu0
        %451 = vdwg.mxu0
        %v452 = vadd.f32 %v434, %v340
        %v453 = vadd.f32 %v439, %v341
        %v454 = vadd.f32 %v444, %v340
        %v455 = vadd.f32 %v449, %v341
        %v456 = vmul.f32 %v452, %v452
        %v457 = vmul.f32 %v453, %v453
        %v458 = vsel %vm354, %v456, 0.0
        %459 = vadd.xlane.f32.xlu0 %v458
        %v460 = vpop.xlane.xlu0 %459
        %v461 = vsel %vm354, %v457, 0.0
        %462 = vadd.xlane.f32.xlu0 %v461
        %v463 = vpop.xlane.xlu0 %462
        %v464 = vmul.f32 %v454, %v454
        %v465 = vmul.f32 %v455, %v455
        %v466 = vsel %vm354, %v464, 0.0
        %467 = vadd.xlane.f32.xlu0 %v466
        %v468 = vpop.xlane.xlu0 %467
        %v469 = vsel %vm354, %v465, 0.0
        %470 = vadd.xlane.f32.xlu0 %v469
        %v471 = vpop.xlane.xlu0 %470
        %v472 = vsub.f32 %v460, %v468
        %v473 = vsub.f32 %v463, %v471
        %v474 = vmin.f32 %v472, 0.0
        %v475 = vmin.f32 %v473, 0.0
        %v476 = vand.u32 2147483647, %v472
        %v477 = vand.u32 2147483647, %v473
        %v478 = vsub.f32 0.0, %v476
        %v479 = vsub.f32 0.0, %v477
        %v480 = vmul.f32 %v478, 1.442695
        %v481 = vpow.pop %v480
        %v482 = vmul.f32 %v479, 1.442695
        %v483 = vpow.pop %v482
        %v484 = vadd.f32 %v481, 1.0
        %v485 = vlog2.pop %v484
        %v486 = vmul.f32 %v485, 0.6931472
        %v487 = vmul.f32 -0.5, %v481
        %v488 = vadd.f32 %v487, 1.0
        %v489 = vmul.f32 %v488, %v481
        %v490 = vand.u32 2147483647, %v481
        %vm491 = vcmp.lt.f32.partialorder %v490, 0.0004427343
        %v492 = vsel %vm491, %v489, %v486
        %v493 = vadd.f32 %v483, 1.0
        %v494 = vlog2.pop %v493
        %v495 = vmul.f32 %v494, 0.6931472
        %v496 = vmul.f32 -0.5, %v483
        %v497 = vadd.f32 %v496, 1.0
        %v498 = vmul.f32 %v497, %v483
        %v499 = vand.u32 2147483647, %v483
        %vm500 = vcmp.lt.f32.partialorder %v499, 0.0004427343
        %v501 = vsel %vm500, %v498, %v495
        %v502 = vsub.f32 %v474, %v492
        %v503 = vsub.f32 %v475, %v501
        %vm504 = vcmask 7168
        %505 = vst.msk [vmem:[%s331] sm:$0xff] %vm504, %v502
        %506 = vst.msk [vmem:[%s331 + $0x8] sm:$0xff] %vm504, %v503
      $region44: #{tpu_custom_call.1} parent=39 // pred_fallthru
        _
      %p507 = scmp.eq.s32.totalorder %s333, 0
      // Predicated region
      $region45: #{tpu_custom_call.1} parent=39 // pred_check
        %p508 = pneg %p507
      $region46: #{tpu_custom_call.1} parent=39 // pred_check_branch
        %510 = sbr.rel (%p508) target = $region48
      $region47: #{tpu_custom_call.1} parent=39 // pred_region
        %vm511 = vcmask 7168
        %512 = vst.msk [vmem:[%s331] sm:$0xff] %vm511, 0.0
        %513 = vst.msk [vmem:[%s331 + $0x8] sm:$0xff] %vm511, 0.0
      $region48: #{tpu_custom_call.1} parent=39 // pred_fallthru
        _
      %s514 = smul.u32 2, %s28
      %p515 = scmp.lt.s32.totalorder %s514, 17
      %s516 = scalar_select %p515, %s514, 17
      %s517 = smul.addr %s516, 8
      %s518 = scalar_lea.vmem %s7, %s517
      // Predicated region
      $region49: #{tpu_custom_call.1} parent=39 // pred_check
        %p519 = pneg %p178
      $region50: #{tpu_custom_call.1} parent=39 // pred_check_branch
        %521 = sbr.rel (%p519) target = $region52
      $region51: #{tpu_custom_call.1} parent=39 // pred_region
        %s522 = smul.u32 2, %s28
      $region52: #{tpu_custom_call.1} parent=39 // pred_fallthru
        _
    $region40: #{tpu_custom_call.1} parent=5 // pred_fallthru
      _
    %p523 = scmp.le.s32.totalorder 2, %s23
    // Predicated region
    $region53: #{tpu_custom_call.1} parent=5 // pred_check
      %p524 = pneg %p523
    $region54: #{tpu_custom_call.1} parent=5 // pred_check_branch
      %526 = sbr.rel (%p524) target = $region56
    $region55: #{tpu_custom_call.1} parent=5 // pred_region
      %s527 = ssub.s32 %s23, 2
      // Predicated region
      $region57: #{tpu_custom_call.1} parent=55 // pred_check
        %p528 = pneg %p184
      $region58: #{tpu_custom_call.1} parent=55 // pred_check_branch
        %530 = sbr.rel (%p528) target = $region60
      $region59: #{tpu_custom_call.1} parent=55 // pred_region
        %s531 = smul.u32 2, %s29
        %p532 = scmp.lt.s32.totalorder %s531, 17
        %s533 = scalar_select %p532, %s531, 17
        %s534 = smul.addr %s533, 8
        %s535 = scalar_lea.vmem %s7, %s534
      $region60: #{tpu_custom_call.1} parent=55 // pred_fallthru
        _
    $region56: #{tpu_custom_call.1} parent=5 // pred_fallthru
      _
  $region6: #{tpu_custom_call.1} parent=0 // loop_footer
    %s27 = sadd.s32 1, %s23
  $region7: #{tpu_custom_call.1} parent=0 // loop_footer_branch
    %22 = sbr.rel target = $region3
  $region8: #{tpu_custom_call.1} parent=0 // loop_exit
    _

</llo_original>
